<compile_context>
chip_gen: v7x
topology: tpu7x:2x2x1
jax: 0.10.0
libtpu: 0.0.40
codegen_flags: <defaults>
</compile_context>

<pallas_src>
import math
import numpy as np
import jax
import jax.numpy as jnp
from jax.experimental import pallas as pl
from jax.experimental.pallas import tpu as pltpu


def _make_lps_kernel(amin, ref_db, f_keep_pad):
    """out = 10*log10(max(amin, |frames @ [cos | -sin]|^2)) - ref_db, one MXU dot/tile."""
    db_scale = 10.0 / float(np.log(10.0))        # one EUP log instead of log10
    def kernel(frames_ref, basis_ref, out_ref):
        acc = jnp.dot(frames_ref[...], basis_ref[...],
                      preferred_element_type=jnp.float32)
        re = acc[:, :f_keep_pad]                 # static, lane-aligned slices
        im = acc[:, f_keep_pad:]
        s = re * re + im * im                    # power spectrum (f32, VPU)
        out_ref[...] = db_scale * jnp.log(jnp.maximum(amin, s)) - ref_db
    return kernel


def _choose_frame_tiling(batch, n_frames_used, tf_cap=1024):
    """Per-batch frame-tile TF and tile count; total grid even and >= 2 for v7x megacore."""
    n_tiles = max(1, -(-n_frames_used // tf_cap))
    while (batch * n_tiles) % 2 != 0 or batch * n_tiles < 2:
        if n_frames_used <= 8 * n_tiles:         # don't shrink below one sublane group
            break
        n_tiles += 1
    tf = -(-n_frames_used // n_tiles)
    tf = ((tf + 7) // 8) * 8                     # sublane-aligned row tiles
    return tf, n_tiles


def band_lps(x, *, n_fft=128, hop_size=64, window_length=128,
             ref=1.0, amin=1e-30, max_len=32, band="low",
             compute_dtype=jnp.bfloat16):
    """JAX/Pallas equivalent of bandLPS.forward (use_vad=False)."""
    assert window_length <= n_fft, "torch.stft requires win_length <= n_fft"
    B, T = x.shape
    x = x.astype(jnp.float32)

    # --- torch.stft(center=True, pad_mode='reflect') padding (glue) ---
    pad = n_fft // 2
    x_pad = jnp.pad(x, ((0, 0), (pad, pad)), mode="reflect")
    Lp = x_pad.shape[1]
    n_frames = 1 + (Lp - n_fft) // hop_size

    # Pad(...)[:, :max_len] keeps only the first max_len frames -> never compute the rest.
    n_frames_used = min(n_frames, max_len)

    # --- periodic Blackman window, center-zero-padded to n_fft (torch.stft behaviour) ---
    n = np.arange(window_length)
    win = (0.42
           - 0.5 * np.cos(2.0 * np.pi * n / window_length)
           + 0.08 * np.cos(4.0 * np.pi * n / window_length))
    win_full = np.zeros(n_fft)
    wl0 = (n_fft - window_length) // 2
    win_full[wl0:wl0 + window_length] = win

    # --- band slice folded into the real-DFT basis: only kept bins get cos/-sin columns ---
    n_freq = n_fft // 2 + 1
    half = n_freq // 2
    if band == "high":
        keep_start, n_keep = half, n_freq - half
    else:
        keep_start, n_keep = 0, half
    F_keep_pad = max(128, ((n_keep + 127) // 128) * 128)       # lane-dense output width
    nn = np.arange(n_fft)[:, None].astype(np.float64)
    ff = (keep_start + np.arange(n_keep))[None, :].astype(np.float64)
    ang = 2.0 * np.pi * nn * ff / n_fft
    basis = np.zeros((n_fft, 2 * F_keep_pad), np.float64)
    basis[:, :n_keep] = np.cos(ang)
    basis[:, F_keep_pad:F_keep_pad + n_keep] = -np.sin(ang)
    basis = win_full[:, None] * basis                          # window baked in
    basis_dev = jnp.asarray(basis.astype(np.float32)).astype(compute_dtype)

    ref_db = float(10.0 * np.log10(max(amin, abs(ref))))

    TF, n_tiles = _choose_frame_tiling(B, n_frames_used)
    n_frames_pad = TF * n_tiles

    def _time_pad_or_slice(needed):
        # Tail padding of the raw audio (cheap) instead of padding the 2x-larger frames.
        if needed <= Lp:
            return x_pad[:, :needed]
        return jnp.pad(x_pad, ((0, 0), (0, needed - Lp)))

    if 2 * hop_size == n_fft:
        # Gather-free framing: frame_k = [half_k, half_{k+1}]; the frames array is
        # materialised exactly once (concat fused with the bf16 cast), lane-dense K=n_fft.
        hop = hop_size
        x_use = _time_pad_or_slice((n_frames_pad + 1) * hop)
        halves = x_use.reshape(B, n_frames_pad + 1, hop)
        frames = jnp.concatenate([halves[:, :-1, :], halves[:, 1:, :]], axis=-1)
    else:
        # TODO(synk): general hop (e.g. n_fft=1724, hop=130) still frames via an XLA gather
        # (~n_fft/hop-fold HBM expansion); a time-tiled in-kernel framing pass would remove it.
        x_use = _time_pad_or_slice((n_frames_pad - 1) * hop_size + n_fft)
        idx = np.arange(n_frames_pad)[:, None] * hop_size + np.arange(n_fft)[None, :]
        frames = x_use[:, idx]
    frames = frames.astype(compute_dtype)       # bf16 MXU operands, f32 accumulation

    kernel = _make_lps_kernel(float(amin), ref_db, F_keep_pad)
    out = pl.pallas_call(
        kernel,
        out_shape=jax.ShapeDtypeStruct((B, n_frames_pad, F_keep_pad), jnp.float32),
        grid_spec=pltpu.PrefetchScalarGridSpec(
            num_scalar_prefetch=0,
            grid=(B, n_tiles),
            in_specs=[
                pl.BlockSpec((None, TF, n_fft), lambda b, t: (b, t, 0)),
                pl.BlockSpec((n_fft, 2 * F_keep_pad), lambda b, t: (0, 0)),
            ],
            out_specs=pl.BlockSpec((None, TF, F_keep_pad), lambda b, t: (b, t, 0)),
        ),
        compiler_params=pltpu.CompilerParams(
            dimension_semantics=("parallel", "parallel")),
    )(frames, basis_dev)
    # TODO(synk): torch promotes the dB result to float64 via `.double()`; kept float32.
    # TODO(synk): output could be written fp16 to halve kernel writeback if downstream allows.

    # strip tile/lane padding; layout already matches torch's transposed spectrogram
    lps_out = out[:, :n_frames_used, :n_keep]                  # [B, frames, kept bins]

    # --- Pad module on the frame axis (band slice already applied via the basis) ---
    if n_frames_used >= max_len:
        padded = lps_out[:, :max_len]
    else:
        repeats = max_len // n_frames_used + 1
        padded = jnp.tile(lps_out, (1, repeats, 1))[:, :max_len]
    return padded[:, None, :, :]                               # [B, 1, max_len, n_keep]


def _reference_band_lps(x, *, n_fft, hop_size, window_length, ref, amin, max_len, band):
    """Pure-numpy float64 reference (rfft-based) mirroring the torch module, for sanity only."""
    x = np.asarray(x, dtype=np.float64)
    B, T = x.shape
    pad = n_fft // 2
    xp = np.pad(x, ((0, 0), (pad, pad)), mode="reflect")
    n_frames = 1 + (xp.shape[1] - n_fft) // hop_size
    n = np.arange(window_length)
    win = (0.42 - 0.5 * np.cos(2 * np.pi * n / window_length)
           + 0.08 * np.cos(4 * np.pi * n / window_length))
    wfull = np.zeros(n_fft)
    wl0 = (n_fft - window_length) // 2
    wfull[wl0:wl0 + window_length] = win
    idx = np.arange(n_frames)[:, None] * hop_size + np.arange(n_fft)[None, :]
    frames = xp[:, idx] * wfull
    S = np.abs(np.fft.rfft(frames, n=n_fft, axis=-1)) ** 2
    lps_ref = 10.0 * np.log10(np.maximum(amin, S)) - 10.0 * np.log10(max(amin, abs(ref)))
    repeats = max_len // n_frames + 1
    padded = np.tile(lps_ref, (1, repeats, 1))[:, :max_len][:, None]
    half = padded.shape[-1] // 2
    return padded[..., half:] if band == "high" else padded[..., :half]


if __name__ == "__main__":
    key = jax.random.PRNGKey(0)
    # small, forward-consistent shapes: batch=2, 1024 audio samples
    x = jax.random.normal(key, (2, 1024), dtype=jnp.float32)

    # 1) scaled-down module defaults: half-overlap STFT (gather-free path), low band
    kw1 = dict(n_fft=128, hop_size=64, window_length=128,
               ref=1.0, amin=1e-30, max_len=32, band="low")
    y1 = jax.block_until_ready(band_lps(x, **kw1))
    assert y1.shape == (2, 1, 32, 32), y1.shape
    assert bool(jnp.all(jnp.isfinite(y1)))
    r1 = _reference_band_lps(np.asarray(x), **kw1)
    e1 = float(np.mean(np.abs(np.asarray(y1, dtype=np.float64) - r1)))
    assert e1 < 0.5, e1

    # 2) general hop (gather path) + frame clamping (n_frames > max_len) + high band
    kw2 = dict(n_fft=128, hop_size=40, window_length=128,
               ref=1.0, amin=1e-30, max_len=16, band="high")
    y2 = jax.block_until_ready(band_lps(x, **kw2))
    assert y2.shape == (2, 1, 16, 33), y2.shape
    assert bool(jnp.all(jnp.isfinite(y2)))
    r2 = _reference_band_lps(np.asarray(x), **kw2)
    e2 = float(np.mean(np.abs(np.asarray(y2, dtype=np.float64) - r2)))
    assert e2 < 0.5, e2

    print("KERNEL_OK")
</pallas_src>

<mosaic_0001>
module attributes {stable_mosaic.version = 11 : i64} {
  func.func @kernel(%arg0: i32, %arg1: i32, %arg2: memref<1x24x128xbf16, #tpu.memory_space<vmem>>, %arg3: memref<128x256xbf16, #tpu.memory_space<vmem>>, %arg4: memref<1x24x128xf32, #tpu.memory_space<vmem>>) attributes {dimension_semantics = [#tpu.dimension_semantics<parallel>, #tpu.dimension_semantics<parallel>], iteration_bounds = array<i64: 2, 1>, scalar_prefetch = 0 : i64, scratch_operands = 0 : i64, tpu.core_type = #tpu.core_type<tc>, window_params = [{transform_indices = @transform_0, window_bounds = array<i64: 1, 24, 128>}, {pipeline_mode = #tpu.pipeline_mode<synchronous>, transform_indices = @transform_1, window_bounds = array<i64: 128, 256>}, {transform_indices = @transform_2, window_bounds = array<i64: 1, 24, 128>}]} {
    %c0 = arith.constant 0 : index
    %c0_0 = arith.constant 0 : index
    %c0_1 = arith.constant 0 : index
    %0 = vector.load %arg2[%c0, %c0_0, %c0_1] : memref<1x24x128xbf16, #tpu.memory_space<vmem>>, vector<1x24x128xbf16>
    %1 = vector.shape_cast %0 : vector<1x24x128xbf16> to vector<24x128xbf16>
    %c0_2 = arith.constant 0 : index
    %c0_3 = arith.constant 0 : index
    %2 = vector.load %arg3[%c0_2, %c0_3] : memref<128x256xbf16, #tpu.memory_space<vmem>>, vector<128x256xbf16>
    %cst = arith.constant dense<0.000000e+00> : vector<24x256xf32>
    %3 = tpu.matmul %1, %2, %cst {dimension_numbers = #tpu.dot_dimension_numbers<[1], [0], [0], [1], [0, 0, 1, 1], [], []>} : vector<24x128xbf16>, vector<128x256xbf16>, vector<24x256xf32> -> vector<24x256xf32>
    %4 = vector.extract_strided_slice %3 {offsets = [0, 0], sizes = [24, 128], strides = [1, 1]} : vector<24x256xf32> to vector<24x128xf32>
    %5 = vector.extract_strided_slice %3 {offsets = [0, 128], sizes = [24, 128], strides = [1, 1]} : vector<24x256xf32> to vector<24x128xf32>
    %6 = arith.mulf %4, %4 : vector<24x128xf32>
    %7 = arith.mulf %5, %5 : vector<24x128xf32>
    %8 = arith.addf %6, %7 : vector<24x128xf32>
    %cst_4 = arith.constant 1.000000e-30 : f32
    %9 = vector.broadcast %cst_4 : f32 to vector<24x128xf32>
    %10 = arith.maximumf %9, %8 : vector<24x128xf32>
    %11 = math.log %10 : vector<24x128xf32>
    %cst_5 = arith.constant 4.34294462 : f32
    %12 = vector.broadcast %cst_5 : f32 to vector<24x128xf32>
    %13 = arith.mulf %12, %11 : vector<24x128xf32>
    %cst_6 = arith.constant 0.000000e+00 : f32
    %14 = vector.broadcast %cst_6 : f32 to vector<24x128xf32>
    %15 = arith.subf %13, %14 : vector<24x128xf32>
    %c0_7 = arith.constant 0 : index
    %c0_8 = arith.constant 0 : index
    %c0_9 = arith.constant 0 : index
    %16 = vector.load %arg4[%c0_7, %c0_8, %c0_9] : memref<1x24x128xf32, #tpu.memory_space<vmem>>, vector<1x24x128xf32>
    %17 = vector.shape_cast %16 : vector<1x24x128xf32> to vector<24x128xf32>
    %18 = vector.shape_cast %15 : vector<24x128xf32> to vector<1x24x128xf32>
    tpu.vector_store %arg4[%c0_7, %c0_8, %c0_9], %18 {strides = array<i32>} : memref<1x24x128xf32, #tpu.memory_space<vmem>>, vector<1x24x128xf32>,
    return
  }
  func.func @transform_0(%arg0: i32, %arg1: i32) -> (i32, i32, i32) {
    %c0_i32 = arith.constant 0 : i32
    %c0_i32_0 = arith.constant 0 : i32
    return %arg0, %arg1, %c0_i32 : i32, i32, i32
  }
  func.func @transform_1(%arg0: i32, %arg1: i32) -> (i32, i32) {
    %c0_i32 = arith.constant 0 : i32
    %c0_i32_0 = arith.constant 0 : i32
    %c0_i32_1 = arith.constant 0 : i32
    return %c0_i32, %c0_i32_0 : i32, i32
  }
  func.func @transform_2(%arg0: i32, %arg1: i32) -> (i32, i32, i32) {
    %c0_i32 = arith.constant 0 : i32
    %c0_i32_0 = arith.constant 0 : i32
    return %arg0, %arg1, %c0_i32 : i32, i32, i32
  }
}

</mosaic_0001>

<llo_original>
// kernel: tpu_custom_call.1
$region0: #{tpu_custom_call.1}
  #allocation0 [shape = 'u32[]', space=smem, size = 0x4, offset = 0x4, fixed_abs, tag = 'smem constant byte address 0x4 - core index']
  #allocation1 [shape = 'u32[144,128]{1,0:T(1,128)}', space=vmem, size = 0x12000, scoped, tag = 'internal scratch']
  %s0 = inlined_call_operand.hbm [shape: bf16[2,24,128], index: 0, kind: input, shape index: {}]
  %s1 = inlined_call_operand.hbm [shape: bf16[128,256], index: 1, kind: input, shape index: {}]
  %s2 = inlined_call_operand.hbm [shape: f32[2,24,128], index: 2, kind: output, shape index: {}]
  %s3 = sld [smem:[#allocation0]]
  $region49: #{tpu_custom_call.1} parent=0
    _
  %s5 = ssub.s32 1, %s3
  %s6 = scalar_select 0, %s5, %s3
  $region1: #{tpu_custom_call.1} parent=0
    #allocation2 [shape = 'u8[12288]{0}', space=vmem, size = 0x3000, scoped, tag = 'input window, operand 0']
    #allocation3 [shape = 's32[2]{0}', space=sflag, size = 0x8, scoped, tag = 'scoped memory for tpu_custom_call.1']
    #allocation4 [shape = 's32[2]{0}', space=sflag, size = 0x8, scoped, tag = 'scoped memory for tpu_custom_call.1']
    #allocation5 [shape = 'u8[65536]{0}', space=vmem, size = 0x10000, scoped, tag = 'input window, operand 1, single buffered']
    #allocation6 [shape = 's32[1]{0}', space=sflag, size = 0x4, scoped, tag = 'scoped memory for tpu_custom_call.1']
    #allocation7 [shape = 'u8[24576]{0}', space=vmem, size = 0x6000, scoped, tag = 'output window, operand 0']
    %7 = vsyncpa [#allocation3], 0
    %s8 = scalar_lea.sflag [#allocation3], 1
    %9 = vsyncpa %s8, 0
    %10 = vsyncpa [#allocation6], 0
    %11 = vsyncpa [#allocation4], 0
    %s12 = scalar_lea.sflag [#allocation4], 1
    %13 = vsyncpa %s12, 0
    loop: start=0, step=1, limit=4
    $region2: #{tpu_custom_call.1} parent=1 // loop_pre_header
      _
    $region3: #{tpu_custom_call.1} parent=1 // loop_header
      %s15 = sphi 0, %s19
      %p16 = scmp.ge.s32.totalorder %s15, 4
      %s22 = sphi 0, %s34
      %s23 = sphi 0, %s30
      %s24 = sphi 0, %s22
      %s25 = sphi 0, %s23
      %s26 = sphi 0, %s24
      %s27 = sphi 0, %s25
      %s39 = sphi 0, %s41
      %s42 = sphi 0, %s39
      %s43 = sphi 0, %s42
      %s59 = sphi 0, %s43
      %s63 = sphi 0, %s63
      %s65 = sphi 0, %s63
      %s66 = sphi 0, %s65
      %s80 = sphi 0, %s66
      %s88 = sphi 0, %s90
      %s91 = sphi 0, %s88
      %s92 = sphi 0, %s91
      %s108 = sphi 0, %s92
    $region4: #{tpu_custom_call.1} parent=1 // loop_header_branch
      %18 = sbr.rel (%p16) target = $region8
    $region5: #{tpu_custom_call.1} parent=1 // loop_body
      %s20 = ssub.s32 %s15, 1
      %s21 = ssub.s32 %s15, 2
      %s28 = sadd.s32 1, %s23
      %p29 = scmp.ge.s32.totalorder %s28, 1
      %s30 = scalar_select %p29, 0, %s28
      %s31 = sadd.s32 1, %s22
      %s32 = scalar_select %p29, %s31, %s22
      %p33 = scmp.ge.s32.totalorder %s32, 2
      %s34 = scalar_select %p33, 0, %s32
      %s35 = ssub.s32 %s22, %s34
      %s36 = ssub.s32 %s23, %s30
      %s37 = sor.u32 %s35, %s36
      %p38 = scmp.eq.s32.totalorder %s37, 0
      %s40 = sadd.s32 %s39, 1
      %s41 = scalar_select %p38, %s39, %s40
      %p44 = pneg %p38
      %p45 = scmp.eq.s32.totalorder %s15, 1
      %p46 = por %p44, %p45
      %p47 = scmp.ne.s32.totalorder %s39, %s42
      %p48 = scmp.eq.s32.totalorder %s15, 0
      %p49 = por %p47, %p48
      %p50 = scmp.ne.s32.totalorder %s39, %s42
      %p51 = scmp.eq.s32.totalorder %s20, 1
      %p52 = por %p50, %p51
      %p53 = scmp.ne.s32.totalorder %s42, %s43
      %p54 = scmp.eq.s32.totalorder %s20, 0
      %p55 = por %p53, %p54
      %p56 = scmp.ne.s32.totalorder %s42, %s43
      %p57 = scmp.eq.s32.totalorder %s21, 1
      %p58 = por %p56, %p57
      %p60 = scmp.ne.s32.totalorder %s43, %s59
      %p61 = scmp.eq.s32.totalorder %s21, 0
      %p62 = por %p60, %p61
      %s64 = sadd.s32 %s63, 1
      %p67 = scmp.eq.s32.totalorder %s15, 1
      %p68 = scmp.ne.s32.totalorder %s63, %s65
      %p69 = scmp.eq.s32.totalorder %s15, 0
      %p70 = por %p68, %p69
      %p71 = scmp.ne.s32.totalorder %s63, %s65
      %p72 = scmp.eq.s32.totalorder %s20, 1
      %p73 = por %p71, %p72
      %p74 = scmp.ne.s32.totalorder %s65, %s66
      %p75 = scmp.eq.s32.totalorder %s20, 0
      %p76 = por %p74, %p75
      %p77 = scmp.ne.s32.totalorder %s65, %s66
      %p78 = scmp.eq.s32.totalorder %s21, 1
      %p79 = por %p77, %p78
      %p81 = scmp.ne.s32.totalorder %s66, %s80
      %p82 = scmp.eq.s32.totalorder %s21, 0
      %p83 = por %p81, %p82
      %s84 = ssub.s32 %s22, %s34
      %s85 = ssub.s32 %s23, %s30
      %s86 = sor.u32 %s84, %s85
      %p87 = scmp.eq.s32.totalorder %s86, 0
      %s89 = sadd.s32 %s88, 1
      %s90 = scalar_select %p87, %s88, %s89
      %p93 = pneg %p87
      %p94 = scmp.eq.s32.totalorder %s15, 1
      %p95 = por %p93, %p94
      %p96 = scmp.ne.s32.totalorder %s88, %s91
      %p97 = scmp.eq.s32.totalorder %s15, 0
      %p98 = por %p96, %p97
      %p99 = scmp.ne.s32.totalorder %s88, %s91
      %p100 = scmp.eq.s32.totalorder %s20, 1
      %p101 = por %p99, %p100
      %p102 = scmp.ne.s32.totalorder %s91, %s92
      %p103 = scmp.eq.s32.totalorder %s20, 0
      %p104 = por %p102, %p103
      %p105 = scmp.ne.s32.totalorder %s91, %s92
      %p106 = scmp.eq.s32.totalorder %s21, 1
      %p107 = por %p105, %p106
      %p109 = scmp.ne.s32.totalorder %s92, %s108
      %p110 = scmp.eq.s32.totalorder %s21, 0
      %p111 = por %p109, %p110
      %p112 = scmp.le.s32.totalorder 1, %s15
      %p113 = scmp.lt.s32.totalorder %s15, 3
      %p114 = pnand %p112, %p113
      %p115 = pneg %p114
      // Predicated region
      $region9: #{tpu_custom_call.1} parent=5 // pred_check
        _
      $region10: #{tpu_custom_call.1} parent=5 // pred_check_branch
        %117 = sbr.rel (%p114) target = $region12
      $region11: #{tpu_custom_call.1} parent=5 // pred_region
        %s118 = ssub.s32 %s15, 1
        // Predicated region
        $region13: #{tpu_custom_call.1} parent=11 // pred_check
          %p119 = pneg %p76
        $region14: #{tpu_custom_call.1} parent=11 // pred_check_branch
          %121 = sbr.rel (%p119) target = $region16
        $region15: #{tpu_custom_call.1} parent=11 // pred_region
          %s123 = ssub.s32 2048, 2048
          %124 = vsyncadd [#allocation6], %s123
          %s125 = sshll.u32 [#allocation5], 4
          %s126 = int_to_ptr.vmem [resolvable:$true] %s125
          %131 = dma.hbm_to_vmem [thread:$0]  %s1, 2048, %s126, [#allocation6], 128, 128, 8
        $region16: #{tpu_custom_call.1} parent=11 // pred_fallthru
          _
      $region12: #{tpu_custom_call.1} parent=5 // pred_fallthru
        _
      %p132 = scmp.lt.s32.totalorder %s15, 2
      // Predicated region
      $region17: #{tpu_custom_call.1} parent=5 // pred_check
        %p133 = pneg %p132
      $region18: #{tpu_custom_call.1} parent=5 // pred_check_branch
        %135 = sbr.rel (%p133) target = $region20
      $region19: #{tpu_custom_call.1} parent=5 // pred_region
        // Predicated region
        $region21: #{tpu_custom_call.1} parent=19 // pred_check
          %p136 = pneg %p49
        $region22: #{tpu_custom_call.1} parent=19 // pred_check_branch
          %138 = sbr.rel (%p136) target = $region24
        $region23: #{tpu_custom_call.1} parent=19 // pred_region
          %s139 = sand.u32 %s39, 1
          %s140 = scalar_lea.sflag [#allocation3], %s139
          %s141 = sand.u32 %s39, 1
          %s142 = smul.addr %s141, 12
          %s143 = scalar_lea.vmem [#allocation2], %s142
          %s144 = smul.u32 3, %s23
          %s146 = ssub.s32 192, 192
          %147 = vsyncadd %s140, %s146
          %s148 = smul.addr %s22, 3
          %s149 = sadd.s32 %s144, %s148
          %s150 = smul.addr %s149, 64
          %s151 = scalar_lea.hbm %s0, %s150
          %s152 = sshll.u32 %s143, 4
          %s153 = int_to_ptr.vmem [resolvable:$true] %s152
          %158 = dma.hbm_to_vmem [thread:$0]  %s151, 192, %s153, %s140, 64, 64, 4
        $region24: #{tpu_custom_call.1} parent=19 // pred_fallthru
          _
      $region20: #{tpu_custom_call.1} parent=5 // pred_fallthru
        _
      %p159 = scmp.le.s32.totalorder 1, %s15
      %p160 = scmp.lt.s32.totalorder %s15, 3
      %p161 = pnand %p159, %p160
      %p162 = pneg %p161
      // Predicated region
      $region25: #{tpu_custom_call.1} parent=5 // pred_check
        _
      $region26: #{tpu_custom_call.1} parent=5 // pred_check_branch
        %164 = sbr.rel (%p161) target = $region28
      $region27: #{tpu_custom_call.1} parent=5 // pred_region
        %s165 = ssub.s32 %s15, 1
        %s166 = sand.u32 %s42, 1
        %s167 = scalar_lea.sflag [#allocation3], %s166
        %s168 = sand.u32 %s42, 1
        %s169 = smul.addr %s168, 12
        %s170 = scalar_lea.vmem [#allocation2], %s169
        // Predicated region
        $region29: #{tpu_custom_call.1} parent=27 // pred_check
          %p171 = pneg %p55
        $region30: #{tpu_custom_call.1} parent=27 // pred_check_branch
          %173 = sbr.rel (%p171) target = $region32
        $region31: #{tpu_custom_call.1} parent=27 // pred_region
          %174 = dma.done %s167, 192
        $region32: #{tpu_custom_call.1} parent=27 // pred_fallthru
          _
        // Predicated region
        $region33: #{tpu_custom_call.1} parent=27 // pred_check
          %p175 = pneg %p76
        $region34: #{tpu_custom_call.1} parent=27 // pred_check_branch
          %177 = sbr.rel (%p175) target = $region36
        $region35: #{tpu_custom_call.1} parent=27 // pred_region
          %178 = dma.done [#allocation6], 2048
        $region36: #{tpu_custom_call.1} parent=27 // pred_fallthru
          _
        %s179 = sand.u32 %s42, 1
        %s180 = scalar_lea.sflag [#allocation3], %s179
        %s181 = sand.u32 %s42, 1
        %s182 = smul.addr %s181, 12
        %s183 = scalar_lea.vmem [#allocation2], %s182
        %p184 = pneg %p55
        %p185 = pneg %p52
        %p186 = pneg %p76
        %p187 = pneg %p73
        %p188 = pneg %p104
        %p189 = pneg %p101
        %s190 = sand.u32 %s91, 1
        %s191 = scalar_lea.sflag [#allocation4], %s190
        %s192 = sand.u32 %s91, 1
        %s193 = smul.addr %s192, 24
        %s194 = scalar_lea.vmem [#allocation7], %s193
        %s195 = smul.u32 3, %s25
        %s196 = smul.u32 3, %s25
        %v198 = vld [vmem:[%s170] sm:$0xf]
        %v199 = vld [vmem:[%s170 + $0x4] sm:$0xf]
        %v200 = vld [vmem:[%s170 + $0x8] sm:$0xf]
        %v201 = vld [vmem:[#allocation5] sm:$0xff]
        %v202 = vld [vmem:[#allocation5 + $0x8] sm:$0xff]
        %v203 = vld [vmem:[#allocation5 + $0x10] sm:$0xff]
        %v204 = vld [vmem:[#allocation5 + $0x18] sm:$0xff]
        %v205 = vld [vmem:[#allocation5 + $0x20] sm:$0xff]
        %v206 = vld [vmem:[#allocation5 + $0x28] sm:$0xff]
        %v207 = vld [vmem:[#allocation5 + $0x30] sm:$0xff]
        %v208 = vld [vmem:[#allocation5 + $0x38] sm:$0xff]
        %v209 = vld [vmem:[#allocation5 + $0x40] sm:$0xff]
        %v210 = vld [vmem:[#allocation5 + $0x48] sm:$0xff]
        %v211 = vld [vmem:[#allocation5 + $0x50] sm:$0xff]
        %v212 = vld [vmem:[#allocation5 + $0x58] sm:$0xff]
        %v213 = vld [vmem:[#allocation5 + $0x60] sm:$0xff]
        %v214 = vld [vmem:[#allocation5 + $0x68] sm:$0xff]
        %v215 = vld [vmem:[#allocation5 + $0x70] sm:$0xff]
        %v216 = vld [vmem:[#allocation5 + $0x78] sm:$0xff]
        %v220 = vunpack.c.l.b16 %v198
        %v221 = vunpack.c.l.b16 %v199
        %v222 = vunpack.c.l.b16 %v200
        %v223 = vpack.c.b16 %v221, %v220
        %v224 = vpack.c.b16 %v222, %v222
        %v243 = vunpack.c.l.b16 %v201
        %v244 = vunpack.c.h.b16 %v201
        %v245 = vunpack.c.l.b16 %v202
        %v246 = vunpack.c.h.b16 %v202
        %v247 = vunpack.c.l.b16 %v203
        %v248 = vunpack.c.h.b16 %v203
        %v249 = vunpack.c.l.b16 %v204
        %v250 = vunpack.c.h.b16 %v204
        %v251 = vunpack.c.l.b16 %v205
        %v252 = vunpack.c.h.b16 %v205
        %v253 = vunpack.c.l.b16 %v206
        %v254 = vunpack.c.h.b16 %v206
        %v255 = vunpack.c.l.b16 %v207
        %v256 = vunpack.c.h.b16 %v207
        %v257 = vunpack.c.l.b16 %v208
        %v258 = vunpack.c.h.b16 %v208
        %v259 = vunpack.c.l.b16 %v209
        %v260 = vunpack.c.h.b16 %v209
        %v261 = vunpack.c.l.b16 %v210
        %v262 = vunpack.c.h.b16 %v210
        %v263 = vunpack.c.l.b16 %v211
        %v264 = vunpack.c.h.b16 %v211
        %v265 = vunpack.c.l.b16 %v212
        %v266 = vunpack.c.h.b16 %v212
        %v267 = vunpack.c.l.b16 %v213
        %v268 = vunpack.c.h.b16 %v213
        %v269 = vunpack.c.l.b16 %v214
        %v270 = vunpack.c.h.b16 %v214
        %v271 = vunpack.c.l.b16 %v215
        %v272 = vunpack.c.h.b16 %v215
        %v273 = vunpack.c.l.b16 %v216
        %v274 = vunpack.c.h.b16 %v216
        %v275 = vpack.c.b16 %v245, %v243
        %v276 = vpack.c.b16 %v246, %v244
        %v277 = vpack.c.b16 %v249, %v247
        %v278 = vpack.c.b16 %v250, %v248
        %v279 = vpack.c.b16 %v253, %v251
        %v280 = vpack.c.b16 %v254, %v252
        %v281 = vpack.c.b16 %v257, %v255
        %v282 = vpack.c.b16 %v258, %v256
        %v283 = vpack.c.b16 %v261, %v259
        %v284 = vpack.c.b16 %v262, %v260
        %v285 = vpack.c.b16 %v265, %v263
        %v286 = vpack.c.b16 %v266, %v264
        %v287 = vpack.c.b16 %v269, %v267
        %v288 = vpack.c.b16 %v270, %v268
        %v289 = vpack.c.b16 %v273, %v271
        %v290 = vpack.c.b16 %v274, %v272
        %307 = vmatprep.subr.bf16.mxu0 %v276
        %308 = vmatpush1.bf16.msra.mxu0 %v275
        %309 = vmatprep.subr.bf16.mxu0 %v278
        %310 = vmatpush1.bf16.msra.mxu0 %v277
        %311 = vmatprep.subr.bf16.mxu0 %v280
        %312 = vmatpush1.bf16.msra.mxu0 %v279
        %313 = vmatprep.subr.bf16.mxu0 %v282
        %314 = vmatpush1.bf16.msra.mxu0 %v281
        %315 = vmatprep.subr.bf16.mxu0 %v284
        %316 = vmatpush1.bf16.msra.mxu0 %v283
        %317 = vmatprep.subr.bf16.mxu0 %v286
        %318 = vmatpush1.bf16.msra.mxu0 %v285
        %319 = vmatprep.subr.bf16.mxu0 %v288
        %320 = vmatpush1.bf16.msra.mxu0 %v287
        %321 = vmatprep.subr.bf16.mxu0 %v290
        %322 = vmatpush1.bf16.msra.mxu0 %v289
        %323 = vmatprep.subr.bf16.mxu0 0
        %324 = vmatpush1.bf16.msra.mxu0 0
        %325 = vmatprep.subr.bf16.mxu0 0
        %326 = vmatpush1.bf16.msra.mxu0 0
        %327 = vmatprep.subr.bf16.mxu0 0
        %328 = vmatpush1.bf16.msra.mxu0 0
        %329 = vmatprep.subr.bf16.mxu0 0
        %330 = vmatpush1.bf16.msra.mxu0 0
        %331 = vmatprep.subr.bf16.mxu0 0
        %332 = vmatpush1.bf16.msra.mxu0 0
        %333 = vmatprep.subr.bf16.mxu0 0
        %334 = vmatpush1.bf16.msra.mxu0 0
        %335 = vmatprep.subr.bf16.mxu0 0
        %336 = vmatpush1.bf16.msra.mxu0 0
        %337 = vmatprep.subr.bf16.mxu0 0
        %338 = vmatpush1.bf16.msra.mxu0 0
        %339 = vmatprep.mubr.bf16.mxu0 0
        %340 = vmatmul.mubr.bf16.gmra.mrb[0].mxu0 %v223
        %v341 = vpop.f32.mrb[0].mxu0
        %v342 = vadd.f32 0.0, %v341
        %v343 = vpop.f32.mrb[0].mxu0
        %v344 = vadd.f32 0.0, %v343
        %v345 = vpop.f32.mrb[0].mxu0
        %v346 = vadd.f32 0.0, %v345
        %v347 = vpop.f32.mrb[0].mxu0
        %v348 = vadd.f32 0.0, %v347
        %349 = vmatprep.mubr.bf16.mxu0 0
        %350 = vmatmul.mubr.bf16.gmra.mrb[0].mxu0 %v224
        %v351 = vpop.f32.mrb[0].mxu0
        %v352 = vadd.f32 0.0, %v351
        %v353 = vpop.f32.mrb[0].mxu0
        %v354 = vadd.f32 0.0, %v353
        %v355 = vpop.f32.mrb[0].mxu0
        %v356 = vpop.f32.mrb[0].mxu0
        %357 = vdwg.mxu0
        %v358 = vmul.f32 %v342, %v342
        %v359 = vmul.f32 %v346, %v346
        %v360 = vmul.f32 %v352, %v352
        %v361 = vmul.f32 %v344, %v344
        %v362 = vmul.f32 %v348, %v348
        %v363 = vmul.f32 %v354, %v354
        %v364 = vadd.f32 %v358, %v361
        %v365 = vadd.f32 %v359, %v362
        %v366 = vadd.f32 %v360, %v363
        %v367 = vmax.f32 %v364, 1e-30
        %v368 = vmax.f32 %v365, 1e-30
        %v369 = vmax.f32 %v366, 1e-30
        %v370 = vlog2.pop %v367
        %v371 = vmul.f32 %v370, 0.6931472
        %v372 = vlog2.pop %v368
        %v373 = vmul.f32 %v372, 0.6931472
        %v374 = vlog2.pop %v369
        %v375 = vmul.f32 %v374, 0.6931472
        %v376 = vmul.f32 %v371, 4.3429446
        %v377 = vmul.f32 %v373, 4.3429446
        %v378 = vmul.f32 %v375, 4.3429446
        %379 = vst [vmem:[%s194] sm:$0xff] %v376
        %380 = vst [vmem:[%s194 + $0x8] sm:$0xff] %v377
        %381 = vst [vmem:[%s194 + $0x10] sm:$0xff] %v378
        %s382 = sand.u32 %s91, 1
        %s383 = scalar_lea.sflag [#allocation4], %s382
        %s384 = sand.u32 %s91, 1
        %s385 = smul.addr %s384, 24
        %s386 = scalar_lea.vmem [#allocation7], %s385
        // Predicated region
        $region37: #{tpu_custom_call.1} parent=27 // pred_check
          %p387 = pneg %p101
        $region38: #{tpu_custom_call.1} parent=27 // pred_check_branch
          %389 = sbr.rel (%p387) target = $region40
        $region39: #{tpu_custom_call.1} parent=27 // pred_region
          %s390 = smul.u32 3, %s25
          %s392 = ssub.s32 384, 384
          %393 = vsyncadd %s383, %s392
          %s394 = smul.addr %s24, 3
          %s395 = sadd.s32 %s390, %s394
          %s396 = smul.addr %s395, 128
          %s397 = scalar_lea.hbm %s2, %s396
          %s398 = sshll.u32 %s386, 4
          %s399 = int_to_ptr.vmem [resolvable:$true] %s398
          %404 = dma.vmem_to_hbm [thread:$0]  %s399, 384, %s397, %s383, 128, 128, 8
        $region40: #{tpu_custom_call.1} parent=27 // pred_fallthru
          _
      $region28: #{tpu_custom_call.1} parent=5 // pred_fallthru
        _
      %p405 = scmp.le.s32.totalorder 2, %s15
      // Predicated region
      $region41: #{tpu_custom_call.1} parent=5 // pred_check
        %p406 = pneg %p405
      $region42: #{tpu_custom_call.1} parent=5 // pred_check_branch
        %408 = sbr.rel (%p406) target = $region44
      $region43: #{tpu_custom_call.1} parent=5 // pred_region
        %s409 = ssub.s32 %s15, 2
        // Predicated region
        $region45: #{tpu_custom_call.1} parent=43 // pred_check
          %p410 = pneg %p107
        $region46: #{tpu_custom_call.1} parent=43 // pred_check_branch
          %412 = sbr.rel (%p410) target = $region48
        $region47: #{tpu_custom_call.1} parent=43 // pred_region
          %s413 = sand.u32 %s92, 1
          %s414 = scalar_lea.sflag [#allocation4], %s413
          %s415 = sand.u32 %s92, 1
          %s416 = smul.addr %s415, 24
          %s417 = scalar_lea.vmem [#allocation7], %s416
          %418 = dma.done %s414, 384
        $region48: #{tpu_custom_call.1} parent=43 // pred_fallthru
          _
      $region44: #{tpu_custom_call.1} parent=5 // pred_fallthru
        _
    $region6: #{tpu_custom_call.1} parent=1 // loop_footer
      %s19 = sadd.s32 1, %s15
    $region7: #{tpu_custom_call.1} parent=1 // loop_footer_branch
      %14 = sbr.rel target = $region3
    $region8: #{tpu_custom_call.1} parent=1 // loop_exit
      _
    %419 = vsyncpa [#allocation3], 1
    %s420 = scalar_lea.sflag [#allocation3], 1
    %421 = vsyncpa %s420, 1
    %422 = vsyncpa [#allocation6], 1
    %423 = vsyncpa [#allocation4], 1
    %s424 = scalar_lea.sflag [#allocation4], 1
    %425 = vsyncpa %s424, 1

</llo_original>
